<compile_context>
chip_gen: v7x
topology: tpu7x:2x2x1
jax: 0.10.0
libtpu: 0.0.40
codegen_flags: <defaults>
</compile_context>

<pallas_src>
import jax
import jax.numpy as jnp
from jax.experimental import pallas as pl
from jax.experimental.pallas import tpu as pltpu

_MASK = -2e30        # select value for non-edges (strictly below _M_INIT)
_M_INIT = -1e30      # initial running max; exp(_MASK - _M_INIT) == 0 exactly
_LEAKY_SLOPE = 0.2   # PyG GATConv default negative_slope


def _round_up(v, m):
    return ((v + m - 1) // m) * m


def _elu(x):
    # exp only sees the clamped negative branch (no inf on large positives).
    return jnp.where(x > 0, x, jnp.exp(jnp.minimum(x, 0.0)) - 1.0)


def _vmem_budget_bytes():
    """Generation-aware VMEM budget (~96 MiB on v5e/v6e, ~48 MiB on v7x)."""
    try:
        cap = int(pltpu.get_tpu_info().vmem_capacity_bytes)
    except Exception:
        cap = 64 * 2 ** 20      # conservative fallback (v7x per-TC VMEM)
    return max(24 * 2 ** 20, (cap * 3) // 4)


def _choose_tiles(n):
    """Return (n_pad, tile_d, tile_s); all multiples of 128 (lane-dense blocks)."""
    if n <= 128:
        return 128, 128, 128
    if n <= 1024:
        tile = _round_up((n + 1) // 2, 128)   # >=2 dst tiles -> both v7x TensorCores
        return 2 * tile, tile, tile
    tile_s = 512
    n_pad = _round_up(n, 512)
    tile_d = 512
    # v5e/v6e (128 MiB VMEM): larger dst tile quarters the xw re-stream.
    if _vmem_budget_bytes() >= 80 * 2 ** 20 and n_pad % 1024 == 0 and n_pad >= 2048:
        tile_d = 1024
    return n_pad, tile_d, tile_s


# ---------------------------------------------------------------------------
# Kernel 1: transposed matmul + bias:  out_t = w_t (d_pad, K) @ x_t (K, n_pad) + b
# Used for the (augmented) GATConv node projections and the final nn.Linear.
# Output lane dim = node tile (lane-dense stores).
# ---------------------------------------------------------------------------
def _matmul_t_kernel(w_ref, x_ref, b_ref, o_ref):
    o_ref[...] = (jnp.dot(w_ref[...], x_ref[...],
                          preferred_element_type=jnp.float32) + b_ref[...])


def _matmul_t(w_t, x_t, b_t, *, tile_n):
    d_pad, k = w_t.shape
    n_pad = x_t.shape[1]
    est = 2 * 4 * (d_pad * k + k * tile_n + d_pad + d_pad * tile_n)
    vmem_limit = int(min(_vmem_budget_bytes(), max(4 * 2 ** 20, 2 * est)))
    return pl.pallas_call(
        _matmul_t_kernel,
        out_shape=jax.ShapeDtypeStruct((d_pad, n_pad), jnp.float32),
        grid_spec=pltpu.PrefetchScalarGridSpec(
            num_scalar_prefetch=0,
            grid=(n_pad // tile_n,),
            in_specs=[
                pl.BlockSpec((d_pad, k), lambda i: (0, 0)),
                pl.BlockSpec((k, tile_n), lambda i: (0, i)),
                pl.BlockSpec((d_pad, 1), lambda i: (0, 0)),
            ],
            out_specs=pl.BlockSpec((d_pad, tile_n), lambda i: (0, i)),
        ),
        compiler_params=pltpu.CompilerParams(
            dimension_semantics=("parallel",),
            vmem_limit_bytes=vmem_limit),
    )(w_t, x_t, b_t)


# ---------------------------------------------------------------------------
# Kernel 2: GAT attention + aggregation, transposed, online (streaming) softmax.
#   grid = (dst_tiles, src_tiles); adj[src, dst] streamed block-by-block (int8).
#   Accumulators/outputs keep nodes on the lane axis (lane-dense).
#   Finalize applies 1/l (approx reciprocal), bias and ELU.
# ---------------------------------------------------------------------------
def _gat_attn_kernel(a_dstT_ref, a_src_ref, xw_ref, adj_ref, bias_ref,
                     out_ref, m_scr, l_scr, acc_scr):
    heads = acc_scr.shape[0]
    j = pl.program_id(1)

    @pl.when(j == 0)
    def _():
        m_scr[...] = jnp.full(m_scr.shape, _M_INIT, jnp.float32)
        l_scr[...] = jnp.zeros(l_scr.shape, jnp.float32)
        acc_scr[...] = jnp.zeros(acc_scr.shape, jnp.float32)

    edge = adj_ref[...] != 0                        # (tile_s, tile_d) bool, shared by heads
    a_src = a_src_ref[...]                          # (tile_s, heads)
    a_dstT = a_dstT_ref[...]                        # (heads, tile_d)

    for h in range(heads):
        # s^T[src, dst] = LeakyReLU(a_dst[dst] + a_src[src]); non-edges -> _MASK.
        s = a_src[:, h:h + 1] + a_dstT[h:h + 1, :]                # (tile_s, tile_d)
        s = jnp.maximum(s, _LEAKY_SLOPE * s)                      # LeakyReLU (slope < 1)
        s = jnp.where(edge, s, _MASK)
        m_prev = m_scr[h]                                         # (1, tile_d)
        m_new = jnp.maximum(m_prev, jnp.max(s, axis=0, keepdims=True))
        # _MASK < _M_INIT <= m_new, so masked entries give exp(<= -1e30) == 0 even for
        # dst columns that have not yet seen an edge: no `* maskf` guard required.
        p = jnp.exp(s - m_new)                                    # (tile_s, tile_d)
        alpha = jnp.exp(m_prev - m_new)                           # (1, tile_d)
        l_scr[h] = alpha * l_scr[h] + jnp.sum(p, axis=0, keepdims=True)
        acc_scr[h] = alpha * acc_scr[h] + jnp.dot(
            xw_ref[h], p.astype(jnp.bfloat16),
            preferred_element_type=jnp.float32)                   # (feat, tile_d)
        m_scr[h] = m_new

    @pl.when(j == pl.num_programs(1) - 1)
    def _():
        for h in range(heads):
            inv_l = pl.reciprocal(jnp.maximum(l_scr[h], 1e-30), approx=True)
            # bias broadcast along lanes; model applies F.elu right after each conv.
            out_ref[h] = _elu(acc_scr[h] * inv_l + bias_ref[h])


def _gat_attention(a_dstT, a_src, xw_t, adj, bias_t, *, tile_d, tile_s):
    heads, feat, n_pad = xw_t.shape
    est = (2 * (4 * heads * tile_d            # a_dstT
                + 4 * tile_s * heads          # a_src
                + 2 * heads * feat * tile_s   # xw (bf16)
                + tile_s * tile_d             # adj (int8)
                + 4 * heads * feat)           # bias
           + 2 * 4 * heads * feat * tile_d    # output (double-buffered)
           + 4 * heads * tile_d * (feat + 2)  # scratch m, l, acc
           + 6 * 4 * tile_s * tile_d)         # s / p / mask temporaries
    vmem_limit = int(min(_vmem_budget_bytes(), max(4 * 2 ** 20, 2 * est)))
    return pl.pallas_call(
        _gat_attn_kernel,
        out_shape=jax.ShapeDtypeStruct((heads, feat, n_pad), jnp.float32),
        grid_spec=pltpu.PrefetchScalarGridSpec(
            num_scalar_prefetch=0,
            grid=(n_pad // tile_d, n_pad // tile_s),
            in_specs=[
                pl.BlockSpec((heads, tile_d), lambda i, j: (0, i)),        # a_dst^T
                pl.BlockSpec((tile_s, heads), lambda i, j: (j, 0)),        # a_src
                pl.BlockSpec((heads, feat, tile_s), lambda i, j: (0, 0, j)),  # xw^T (bf16)
                pl.BlockSpec((tile_s, tile_d), lambda i, j: (j, i)),       # adj[src, dst]
                pl.BlockSpec((heads, feat, 1), lambda i, j: (0, 0, 0)),    # bias
            ],
            out_specs=pl.BlockSpec((heads, feat, tile_d), lambda i, j: (0, 0, i)),
            scratch_shapes=[
                pltpu.VMEM((heads, 1, tile_d), jnp.float32),      # running max
                pltpu.VMEM((heads, 1, tile_d), jnp.float32),      # running denom
                pltpu.VMEM((heads, feat, tile_d), jnp.float32),   # acc^T
            ],
        ),
        compiler_params=pltpu.CompilerParams(
            dimension_semantics=("parallel", "arbitrary"),
            vmem_limit_bytes=vmem_limit),
    )(a_dstT, a_src, xw_t, adj, bias_t)


# ---------------------------------------------------------------------------
# Wrapper: parameter folding, padding, layer orchestration (layout plumbing only)
# ---------------------------------------------------------------------------
def _augment_gat_weights(w, att_src, att_dst, heads, feat):
    """Fold per-head attention projections into the node projection; return W^T."""
    f_in = w.shape[0]
    w_r = w.reshape(f_in, heads, feat)
    w_asrc = jnp.einsum("ihf,hf->ih", w_r, att_src)            # (f_in, heads)
    w_adst = jnp.einsum("ihf,hf->ih", w_r, att_dst)            # (f_in, heads)
    w_aug = jnp.concatenate([w, w_asrc, w_adst], axis=1)       # (f_in, H*F + 2H)
    d = heads * feat + 2 * heads
    d_pad = _round_up(d, 128)
    w_aug = jnp.pad(w_aug, ((0, 0), (0, d_pad - d)))
    return w_aug.T                                             # (d_pad, f_in)


def _split_projection_t(proj_t, heads, feat):
    """proj_t (d_pad, n_pad) -> xw^T (H,F,n) bf16, a_src (n,H) f32, a_dst^T (H,n) f32."""
    hf = heads * feat
    xw_t = proj_t[:hf].reshape(heads, feat, -1).astype(jnp.bfloat16)
    a_src = proj_t[hf:hf + heads].T
    a_dstT = proj_t[hf + heads:hf + 2 * heads]
    return xw_t, a_src, a_dstT


def gatnet_forward(x, edge_index, params, *, heads, hidden, out_channels):
    n = x.shape[0]
    n_pad, tile_d, tile_s = _choose_tiles(n)
    tile_n = tile_d

    # All node data kept transposed (features x nodes) so every kernel stores lane-dense.
    x_t = jnp.zeros((x.shape[1], n_pad), jnp.float32).at[:, :n].set(
        x.T.astype(jnp.float32))

    # Dense adjacency mask adj[src, dst] as int8 with self-loops (PyG add_self_loops=True);
    # padded rows/columns stay empty and are sliced off at the end.
    adj = jnp.zeros((n_pad, n_pad), jnp.int8)
    adj = adj.at[edge_index[0], edge_index[1]].set(1)
    adj = adj.at[jnp.arange(n), jnp.arange(n)].set(1)

    def zero_b(d):
        return jnp.zeros((d, 1), jnp.float32)

    # ---- conv1: GATConv(in_c, hidden, heads=heads, concat=True) + ELU ----
    w1_t = _augment_gat_weights(params["w1"], params["att_src1"],
                                params["att_dst1"], heads, hidden)
    proj1_t = _matmul_t(w1_t, x_t, zero_b(w1_t.shape[0]), tile_n=tile_n)
    xw1_t, a_src1, a_dst1T = _split_projection_t(proj1_t, heads, hidden)
    b1_t = params["b1"].reshape(heads, hidden, 1)
    h1_t = _gat_attention(a_dst1T, a_src1, xw1_t, adj, b1_t,
                          tile_d=tile_d, tile_s=tile_s)     # (heads, hidden, n_pad)

    # ---- conv2: GATConv(heads*hidden, hidden, heads=1, concat=False) + ELU ----
    h1_flat_t = h1_t.reshape(heads * hidden, n_pad)         # concat over heads
    w2_t = _augment_gat_weights(params["w2"], params["att_src2"],
                                params["att_dst2"], 1, hidden)
    proj2_t = _matmul_t(w2_t, h1_flat_t, zero_b(w2_t.shape[0]), tile_n=tile_n)
    xw2_t, a_src2, a_dst2T = _split_projection_t(proj2_t, 1, hidden)
    b2_t = params["b2"].reshape(1, hidden, 1)
    h2_t = _gat_attention(a_dst2T, a_src2, xw2_t, adj, b2_t,
                          tile_d=tile_d, tile_s=tile_s)     # (1, hidden, n_pad)

    # ---- lin: Linear(hidden, out_channels), lane-padded output ----
    oc_pad = _round_up(out_channels, 128)
    w_lin_t = jnp.pad(params["w_lin"], ((0, 0), (0, oc_pad - out_channels))).T
    b_lin_t = jnp.pad(params["b_lin"], ((0, 0), (0, oc_pad - out_channels))).T
    out_t = _matmul_t(w_lin_t, h2_t.reshape(hidden, n_pad), b_lin_t, tile_n=tile_n)
    return out_t[:out_channels, :n].T


def init_params(key, in_channels, hidden, out_channels, heads):
    ks = jax.random.split(key, 10)
    s = 0.1
    return {
        # conv1: GATConv(in, hidden, heads=heads, concat=True)
        "w1": s * jax.random.normal(ks[0], (in_channels, heads * hidden), jnp.float32),
        "att_src1": s * jax.random.normal(ks[1], (heads, hidden), jnp.float32),
        "att_dst1": s * jax.random.normal(ks[2], (heads, hidden), jnp.float32),
        "b1": s * jax.random.normal(ks[3], (1, heads * hidden), jnp.float32),
        # conv2: GATConv(heads*hidden, hidden, heads=1, concat=False)
        "w2": s * jax.random.normal(ks[4], (heads * hidden, hidden), jnp.float32),
        "att_src2": s * jax.random.normal(ks[5], (1, hidden), jnp.float32),
        "att_dst2": s * jax.random.normal(ks[6], (1, hidden), jnp.float32),
        "b2": s * jax.random.normal(ks[7], (1, hidden), jnp.float32),
        # lin: Linear(hidden, out_channels)  (stored as (hidden, out) for x @ W)
        "w_lin": s * jax.random.normal(ks[8], (hidden, out_channels), jnp.float32),
        "b_lin": s * jax.random.normal(ks[9], (1, out_channels), jnp.float32),
    }


def _reference_forward(x, edge_index, params, *, heads, hidden, out_channels):
    """Pure-JAX dense reference (same semantics) for a numerical sanity check."""
    hp = jax.lax.Precision.HIGHEST
    n = x.shape[0]
    adj = jnp.zeros((n, n), jnp.float32)
    adj = adj.at[edge_index[1], edge_index[0]].set(1.0)      # adj[dst, src]
    adj = adj.at[jnp.arange(n), jnp.arange(n)].set(1.0)

    def layer(h_in, w, att_src, att_dst, bias, nh, nf, concat):
        xw = jnp.dot(h_in, w, precision=hp)
        outs = []
        for hh in range(nh):
            xh = xw[:, hh * nf:(hh + 1) * nf]
            a_s = jnp.dot(xh, att_src[hh], precision=hp)
            a_d = jnp.dot(xh, att_dst[hh], precision=hp)
            e = a_d[:, None] + a_s[None, :]
            e = jnp.where(e > 0, e, _LEAKY_SLOPE * e)
            e = jnp.where(adj > 0, e, _MASK)
            p = jax.nn.softmax(e, axis=1)
            outs.append(jnp.dot(p, xh, precision=hp))
        out = jnp.concatenate(outs, -1) if concat else sum(outs) / nh
        return out + bias

    h1 = jax.nn.elu(layer(x, params["w1"], params["att_src1"],
                          params["att_dst1"], params["b1"], heads, hidden, True))
    h2 = jax.nn.elu(layer(h1, params["w2"], params["att_src2"],
                          params["att_dst2"], params["b2"], 1, hidden, False))
    return jnp.dot(h2, params["w_lin"], precision=hp) + params["b_lin"]


if __name__ == "__main__":
    N, IN_C, HID, OUT_C, HEADS = 8, 16, 8, 4, 4

    key = jax.random.PRNGKey(0)
    kx, kp = jax.random.split(key)
    x = jax.random.normal(kx, (N, IN_C), jnp.float32)

    # Small directed ring graph (both directions): src -> dst
    src = jnp.concatenate([jnp.arange(N), jnp.arange(N)])
    dst = jnp.concatenate([(jnp.arange(N) + 1) % N, (jnp.arange(N) - 1) % N])
    edge_index = jnp.stack([src, dst]).astype(jnp.int32)     # (2, E)

    params = init_params(kp, IN_C, HID, OUT_C, HEADS)

    out = gatnet_forward(x, edge_index, params,
                         heads=HEADS, hidden=HID, out_channels=OUT_C)
    jax.block_until_ready(out)
    assert out.shape == (N, OUT_C)

    ref = _reference_forward(x, edge_index, params,
                             heads=HEADS, hidden=HID, out_channels=OUT_C)
    assert jnp.allclose(out, ref, rtol=2e-2, atol=2e-2), (
        "max abs diff %s" % jnp.max(jnp.abs(out - ref)))
    print("KERNEL_OK")
</pallas_src>

<mosaic_0001>
module attributes {stable_mosaic.version = 11 : i64} {
  func.func @_matmul_t_kernel(%arg0: i32, %arg1: memref<128x16xf32, #tpu.memory_space<vmem>>, %arg2: memref<16x128xf32, #tpu.memory_space<vmem>>, %arg3: memref<128x1xf32, #tpu.memory_space<vmem>>, %arg4: memref<128x128xf32, #tpu.memory_space<vmem>>) attributes {dimension_semantics = [#tpu.dimension_semantics<parallel>], iteration_bounds = array<i64: 1>, scalar_prefetch = 0 : i64, scratch_operands = 0 : i64, tpu.core_type = #tpu.core_type<tc>, window_params = [{pipeline_mode = #tpu.pipeline_mode<synchronous>, transform_indices = @transform_0, window_bounds = array<i64: 128, 16>}, {transform_indices = @transform_1, window_bounds = array<i64: 16, 128>}, {pipeline_mode = #tpu.pipeline_mode<synchronous>, transform_indices = @transform_2, window_bounds = array<i64: 128, 1>}, {transform_indices = @transform_3, window_bounds = array<i64: 128, 128>}]} {
    %c0 = arith.constant 0 : index
    %c0_0 = arith.constant 0 : index
    %0 = vector.load %arg1[%c0, %c0_0] : memref<128x16xf32, #tpu.memory_space<vmem>>, vector<128x16xf32>
    %c0_1 = arith.constant 0 : index
    %c0_2 = arith.constant 0 : index
    %1 = vector.load %arg2[%c0_1, %c0_2] : memref<16x128xf32, #tpu.memory_space<vmem>>, vector<16x128xf32>
    %cst = arith.constant dense<0.000000e+00> : vector<128x128xf32>
    %2 = tpu.matmul %0, %1, %cst {dimension_numbers = #tpu.dot_dimension_numbers<[1], [0], [0], [1], [0, 0, 1, 1], [], []>} : vector<128x16xf32>, vector<16x128xf32>, vector<128x128xf32> -> vector<128x128xf32>
    %c0_3 = arith.constant 0 : index
    %c0_4 = arith.constant 0 : index
    %3 = vector.load %arg3[%c0_3, %c0_4] : memref<128x1xf32, #tpu.memory_space<vmem>>, vector<128x1xf32>
    %4 = vector.broadcast %3 : vector<128x1xf32> to vector<128x128xf32>
    %5 = arith.addf %2, %4 : vector<128x128xf32>
    %c0_5 = arith.constant 0 : index
    %c0_6 = arith.constant 0 : index
    %6 = vector.load %arg4[%c0_5, %c0_6] : memref<128x128xf32, #tpu.memory_space<vmem>>, vector<128x128xf32>
    tpu.vector_store %arg4[%c0_5, %c0_6], %5 {strides = array<i32>} : memref<128x128xf32, #tpu.memory_space<vmem>>, vector<128x128xf32>,
    return
  }
  func.func @transform_0(%arg0: i32) -> (i32, i32) {
    %c0_i32 = arith.constant 0 : i32
    %c0_i32_0 = arith.constant 0 : i32
    %c0_i32_1 = arith.constant 0 : i32
    return %c0_i32, %c0_i32_0 : i32, i32
  }
  func.func @transform_1(%arg0: i32) -> (i32, i32) {
    %c0_i32 = arith.constant 0 : i32
    %c0_i32_0 = arith.constant 0 : i32
    return %c0_i32, %arg0 : i32, i32
  }
  func.func @transform_2(%arg0: i32) -> (i32, i32) {
    %c0_i32 = arith.constant 0 : i32
    %c0_i32_0 = arith.constant 0 : i32
    %c0_i32_1 = arith.constant 0 : i32
    return %c0_i32, %c0_i32_0 : i32, i32
  }
  func.func @transform_3(%arg0: i32) -> (i32, i32) {
    %c0_i32 = arith.constant 0 : i32
    %c0_i32_0 = arith.constant 0 : i32
    return %c0_i32, %arg0 : i32, i32
  }
}

</mosaic_0001>

<llo_original>
// kernel: tpu_custom_call.1
$region0: #{tpu_custom_call.1}
  #allocation0 [shape = 'u32[]', space=smem, size = 0x4, offset = 0x4, fixed_abs, tag = 'smem constant byte address 0x4 - core index']
  #allocation1 [shape = 'u32[144,128]{1,0:T(1,128)}', space=vmem, size = 0x12000, scoped, tag = 'internal scratch']
  %s0 = inlined_call_operand.vmem [shape: f32[128,16], index: 0, kind: input, shape index: {}]
  %s1 = inlined_call_operand.vmem [shape: f32[16,128], index: 1, kind: input, shape index: {}]
  %s2 = inlined_call_operand.vmem [shape: f32[128,1], index: 2, kind: input, shape index: {}]
  %s3 = inlined_call_operand.hbm [shape: f32[128,128], index: 3, kind: output, shape index: {}]
  %s4 = sld [smem:[#allocation0]]
  $region22: #{tpu_custom_call.1} parent=0
    _
  %s6 = ssub.s32 1, %s4
  %s7 = scalar_select 0, %s6, %s4
  $region1: #{tpu_custom_call.1} parent=0
    #allocation2 [shape = 'u8[65536]{0}', space=vmem, size = 0x10000, scoped, tag = 'output window, operand 0, single buffered']
    #allocation3 [shape = 's32[1]{0}', space=sflag, size = 0x4, scoped, tag = 'scoped memory for tpu_custom_call.1']
    %8 = vsyncpa [#allocation3], 0
    // Predicated region
    $region2: #{tpu_custom_call.1} parent=1 // pred_check
      _
    $region3: #{tpu_custom_call.1} parent=1 // pred_check_branch
      %10 = sbr.rel (0) target = $region5
    $region4: #{tpu_custom_call.1} parent=1 // pred_region
      _
    $region5: #{tpu_custom_call.1} parent=1 // pred_fallthru
      _
    // Predicated region
    $region6: #{tpu_custom_call.1} parent=1 // pred_check
      _
    $region7: #{tpu_custom_call.1} parent=1 // pred_check_branch
      %12 = sbr.rel (0) target = $region9
    $region8: #{tpu_custom_call.1} parent=1 // pred_region
      _
    $region9: #{tpu_custom_call.1} parent=1 // pred_fallthru
      _
    // Predicated region
    $region10: #{tpu_custom_call.1} parent=1 // pred_check
      _
    $region11: #{tpu_custom_call.1} parent=1 // pred_check_branch
      %14 = sbr.rel (0) target = $region13
    $region12: #{tpu_custom_call.1} parent=1 // pred_region
      _
    $region13: #{tpu_custom_call.1} parent=1 // pred_fallthru
      _
    %v15 = vld [vmem:[%s0] sm:$0xff]
    %v16 = vld [vmem:[%s0 + $0x8] sm:$0xff]
    %v17 = vld [vmem:[%s0 + $0x10] sm:$0xff]
    %v18 = vld [vmem:[%s0 + $0x18] sm:$0xff]
    %v19 = vld [vmem:[%s0 + $0x20] sm:$0xff]
    %v20 = vld [vmem:[%s0 + $0x28] sm:$0xff]
    %v21 = vld [vmem:[%s0 + $0x30] sm:$0xff]
    %v22 = vld [vmem:[%s0 + $0x38] sm:$0xff]
    %v23 = vld [vmem:[%s0 + $0x40] sm:$0xff]
    %v24 = vld [vmem:[%s0 + $0x48] sm:$0xff]
    %v25 = vld [vmem:[%s0 + $0x50] sm:$0xff]
    %v26 = vld [vmem:[%s0 + $0x58] sm:$0xff]
    %v27 = vld [vmem:[%s0 + $0x60] sm:$0xff]
    %v28 = vld [vmem:[%s0 + $0x68] sm:$0xff]
    %v29 = vld [vmem:[%s0 + $0x70] sm:$0xff]
    %v30 = vld [vmem:[%s0 + $0x78] sm:$0xff]
    %v31 = vld [vmem:[%s1] sm:$0xff]
    %v32 = vld [vmem:[%s1 + $0x8] sm:$0xff]
    %v33 = vld [vmem:[%s2] sm:$0xff]
    %v34 = vld [vmem:[%s2 + $0x8] sm:$0xff]
    %v35 = vld [vmem:[%s2 + $0x10] sm:$0xff]
    %v36 = vld [vmem:[%s2 + $0x18] sm:$0xff]
    %v37 = vld [vmem:[%s2 + $0x20] sm:$0xff]
    %v38 = vld [vmem:[%s2 + $0x28] sm:$0xff]
    %v39 = vld [vmem:[%s2 + $0x30] sm:$0xff]
    %v40 = vld [vmem:[%s2 + $0x38] sm:$0xff]
    %v41 = vld [vmem:[%s2 + $0x40] sm:$0xff]
    %v42 = vld [vmem:[%s2 + $0x48] sm:$0xff]
    %v43 = vld [vmem:[%s2 + $0x50] sm:$0xff]
    %v44 = vld [vmem:[%s2 + $0x58] sm:$0xff]
    %v45 = vld [vmem:[%s2 + $0x60] sm:$0xff]
    %v46 = vld [vmem:[%s2 + $0x68] sm:$0xff]
    %v47 = vld [vmem:[%s2 + $0x70] sm:$0xff]
    %v48 = vld [vmem:[%s2 + $0x78] sm:$0xff]
    %50 = vset.pattern.permute.xlu0 0
    %51 = vperm.xlu0 %50, %v33
    %v52 = vpop.permute.xlu0 %51
    %55 = vset.pattern.permute.xlu0 0
    %56 = vperm.xlu0 %55, %v34
    %v57 = vpop.permute.xlu0 %56
    %60 = vset.pattern.permute.xlu0 0
    %61 = vperm.xlu0 %60, %v35
    %v62 = vpop.permute.xlu0 %61
    %65 = vset.pattern.permute.xlu0 0
    %66 = vperm.xlu0 %65, %v36
    %v67 = vpop.permute.xlu0 %66
    %70 = vset.pattern.permute.xlu0 0
    %71 = vperm.xlu0 %70, %v37
    %v72 = vpop.permute.xlu0 %71
    %75 = vset.pattern.permute.xlu0 0
    %76 = vperm.xlu0 %75, %v38
    %v77 = vpop.permute.xlu0 %76
    %80 = vset.pattern.permute.xlu0 0
    %81 = vperm.xlu0 %80, %v39
    %v82 = vpop.permute.xlu0 %81
    %85 = vset.pattern.permute.xlu0 0
    %86 = vperm.xlu0 %85, %v40
    %v87 = vpop.permute.xlu0 %86
    %90 = vset.pattern.permute.xlu0 0
    %91 = vperm.xlu0 %90, %v41
    %v92 = vpop.permute.xlu0 %91
    %95 = vset.pattern.permute.xlu0 0
    %96 = vperm.xlu0 %95, %v42
    %v97 = vpop.permute.xlu0 %96
    %100 = vset.pattern.permute.xlu0 0
    %101 = vperm.xlu0 %100, %v43
    %v102 = vpop.permute.xlu0 %101
    %105 = vset.pattern.permute.xlu0 0
    %106 = vperm.xlu0 %105, %v44
    %v107 = vpop.permute.xlu0 %106
    %110 = vset.pattern.permute.xlu0 0
    %111 = vperm.xlu0 %110, %v45
    %v112 = vpop.permute.xlu0 %111
    %115 = vset.pattern.permute.xlu0 0
    %116 = vperm.xlu0 %115, %v46
    %v117 = vpop.permute.xlu0 %116
    %120 = vset.pattern.permute.xlu0 0
    %121 = vperm.xlu0 %120, %v47
    %v122 = vpop.permute.xlu0 %121
    %125 = vset.pattern.permute.xlu0 0
    %126 = vperm.xlu0 %125, %v48
    %v127 = vpop.permute.xlu0 %126
    %vm129 = vcmask 130048
    %v131 = vsel %vm129, %v15, 0
    %v134 = vsel %vm129, %v16, 0
    %v137 = vsel %vm129, %v17, 0
    %v140 = vsel %vm129, %v18, 0
    %v143 = vsel %vm129, %v19, 0
    %v146 = vsel %vm129, %v20, 0
    %v149 = vsel %vm129, %v21, 0
    %v152 = vsel %vm129, %v22, 0
    %v155 = vsel %vm129, %v23, 0
    %v158 = vsel %vm129, %v24, 0
    %v161 = vsel %vm129, %v25, 0
    %v164 = vsel %vm129, %v26, 0
    %v167 = vsel %vm129, %v27, 0
    %v170 = vsel %vm129, %v28, 0
    %v173 = vsel %vm129, %v29, 0
    %v176 = vsel %vm129, %v30, 0
    %178 = vmatprep.subr.mxu0 0.0
    %179 = vmatpush1.msra.mxu0 %v31
    %180 = vmatprep.subr.mxu0 0.0
    %181 = vmatpush1.msra.mxu0 %v32
    %182 = vmatprep.subr.mxu0 0.0
    %183 = vmatpush1.msra.mxu0 0.0
    %184 = vmatprep.subr.mxu0 0.0
    %185 = vmatpush1.msra.mxu0 0.0
    %186 = vmatprep.subr.mxu0 0.0
    %187 = vmatpush1.msra.mxu0 0.0
    %188 = vmatprep.subr.mxu0 0.0
    %189 = vmatpush1.msra.mxu0 0.0
    %190 = vmatprep.subr.mxu0 0.0
    %191 = vmatpush1.msra.mxu0 0.0
    %192 = vmatprep.subr.mxu0 0.0
    %193 = vmatpush1.msra.mxu0 0.0
    %194 = vmatprep.subr.mxu0 0.0
    %195 = vmatpush1.msra.mxu0 0.0
    %196 = vmatprep.subr.mxu0 0.0
    %197 = vmatpush1.msra.mxu0 0.0
    %198 = vmatprep.subr.mxu0 0.0
    %199 = vmatpush1.msra.mxu0 0.0
    %200 = vmatprep.subr.mxu0 0.0
    %201 = vmatpush1.msra.mxu0 0.0
    %202 = vmatprep.subr.mxu0 0.0
    %203 = vmatpush1.msra.mxu0 0.0
    %204 = vmatprep.subr.mxu0 0.0
    %205 = vmatpush1.msra.mxu0 0.0
    %206 = vmatprep.subr.mxu0 0.0
    %207 = vmatpush1.msra.mxu0 0.0
    %208 = vmatprep.subr.mxu0 0.0
    %209 = vmatpush1.msra.mxu0 0.0
    %210 = vmatprep.subr.mxu0 0.0
    %211 = vmatpush1.msra.mxu0 0.0
    %212 = vmatprep.subr.mxu0 0.0
    %213 = vmatpush1.msra.mxu0 0.0
    %214 = vmatprep.subr.mxu0 0.0
    %215 = vmatpush1.msra.mxu0 0.0
    %216 = vmatprep.subr.mxu0 0.0
    %217 = vmatpush1.msra.mxu0 0.0
    %218 = vmatprep.subr.mxu0 0.0
    %219 = vmatpush1.msra.mxu0 0.0
    %220 = vmatprep.subr.mxu0 0.0
    %221 = vmatpush1.msra.mxu0 0.0
    %222 = vmatprep.subr.mxu0 0.0
    %223 = vmatpush1.msra.mxu0 0.0
    %224 = vmatprep.subr.mxu0 0.0
    %225 = vmatpush1.msra.mxu0 0.0
    %226 = vmatprep.subr.mxu0 0.0
    %227 = vmatpush1.msra.mxu0 0.0
    %228 = vmatprep.subr.mxu0 0.0
    %229 = vmatpush1.msra.mxu0 0.0
    %230 = vmatprep.subr.mxu0 0.0
    %231 = vmatpush1.msra.mxu0 0.0
    %232 = vmatprep.subr.mxu0 0.0
    %233 = vmatpush1.msra.mxu0 0.0
    %234 = vmatprep.subr.mxu0 0.0
    %235 = vmatpush1.msra.mxu0 0.0
    %236 = vmatprep.subr.mxu0 0.0
    %237 = vmatpush1.msra.mxu0 0.0
    %238 = vmatprep.subr.mxu0 0.0
    %239 = vmatpush1.msra.mxu0 0.0
    %240 = vmatprep.subr.mxu0 0.0
    %241 = vmatpush1.msra.mxu0 0.0
    %242 = vmatprep.mubr.f32.mxu0 0.0
    %243 = vmatmul.mubr.f32.gmra.mrb[0].mxu0 %v131
    %v244 = vpop.f32.mrb[0].mxu0
    %v245 = vadd.f32 %v52, %v244
    %v246 = vpop.f32.mrb[0].mxu0
    %247 = vmatprep.mubr.f32.mxu0 0.0
    %248 = vmatmul.mubr.f32.gmra.mrb[0].mxu0 %v134
    %v249 = vpop.f32.mrb[0].mxu0
    %v250 = vadd.f32 %v57, %v249
    %v251 = vpop.f32.mrb[0].mxu0
    %252 = vmatprep.mubr.f32.mxu0 0.0
    %253 = vmatmul.mubr.f32.gmra.mrb[0].mxu0 %v137
    %v254 = vpop.f32.mrb[0].mxu0
    %v255 = vadd.f32 %v62, %v254
    %v256 = vpop.f32.mrb[0].mxu0
    %257 = vmatprep.mubr.f32.mxu0 0.0
    %258 = vmatmul.mubr.f32.gmra.mrb[0].mxu0 %v140
    %v259 = vpop.f32.mrb[0].mxu0
    %v260 = vadd.f32 %v67, %v259
    %v261 = vpop.f32.mrb[0].mxu0
    %262 = vmatprep.mubr.f32.mxu0 0.0
    %263 = vmatmul.mubr.f32.gmra.mrb[0].mxu0 %v143
    %v264 = vpop.f32.mrb[0].mxu0
    %v265 = vadd.f32 %v72, %v264
    %v266 = vpop.f32.mrb[0].mxu0
    %267 = vmatprep.mubr.f32.mxu0 0.0
    %268 = vmatmul.mubr.f32.gmra.mrb[0].mxu0 %v146
    %v269 = vpop.f32.mrb[0].mxu0
    %v270 = vadd.f32 %v77, %v269
    %v271 = vpop.f32.mrb[0].mxu0
    %272 = vmatprep.mubr.f32.mxu0 0.0
    %273 = vmatmul.mubr.f32.gmra.mrb[0].mxu0 %v149
    %v274 = vpop.f32.mrb[0].mxu0
    %v275 = vadd.f32 %v82, %v274
    %v276 = vpop.f32.mrb[0].mxu0
    %277 = vmatprep.mubr.f32.mxu0 0.0
    %278 = vmatmul.mubr.f32.gmra.mrb[0].mxu0 %v152
    %v279 = vpop.f32.mrb[0].mxu0
    %v280 = vadd.f32 %v87, %v279
    %v281 = vpop.f32.mrb[0].mxu0
    %282 = vmatprep.mubr.f32.mxu0 0.0
    %283 = vmatmul.mubr.f32.gmra.mrb[0].mxu0 %v155
    %v284 = vpop.f32.mrb[0].mxu0
    %v285 = vadd.f32 %v92, %v284
    %v286 = vpop.f32.mrb[0].mxu0
    %287 = vmatprep.mubr.f32.mxu0 0.0
    %288 = vmatmul.mubr.f32.gmra.mrb[0].mxu0 %v158
    %v289 = vpop.f32.mrb[0].mxu0
    %v290 = vadd.f32 %v97, %v289
    %v291 = vpop.f32.mrb[0].mxu0
    %292 = vmatprep.mubr.f32.mxu0 0.0
    %293 = vmatmul.mubr.f32.gmra.mrb[0].mxu0 %v161
    %v294 = vpop.f32.mrb[0].mxu0
    %v295 = vadd.f32 %v102, %v294
    %v296 = vpop.f32.mrb[0].mxu0
    %297 = vmatprep.mubr.f32.mxu0 0.0
    %298 = vmatmul.mubr.f32.gmra.mrb[0].mxu0 %v164
    %v299 = vpop.f32.mrb[0].mxu0
    %v300 = vadd.f32 %v107, %v299
    %v301 = vpop.f32.mrb[0].mxu0
    %302 = vmatprep.mubr.f32.mxu0 0.0
    %303 = vmatmul.mubr.f32.gmra.mrb[0].mxu0 %v167
    %v304 = vpop.f32.mrb[0].mxu0
    %v305 = vadd.f32 %v112, %v304
    %v306 = vpop.f32.mrb[0].mxu0
    %307 = vmatprep.mubr.f32.mxu0 0.0
    %308 = vmatmul.mubr.f32.gmra.mrb[0].mxu0 %v170
    %v309 = vpop.f32.mrb[0].mxu0
    %v310 = vadd.f32 %v117, %v309
    %v311 = vpop.f32.mrb[0].mxu0
    %312 = vmatprep.mubr.f32.mxu0 0.0
    %313 = vmatmul.mubr.f32.gmra.mrb[0].mxu0 %v173
    %v314 = vpop.f32.mrb[0].mxu0
    %v315 = vadd.f32 %v122, %v314
    %v316 = vpop.f32.mrb[0].mxu0
    %317 = vmatprep.mubr.f32.mxu0 0.0
    %318 = vmatmul.mubr.f32.gmra.mrb[0].mxu0 %v176
    %v319 = vpop.f32.mrb[0].mxu0
    %v320 = vadd.f32 %v127, %v319
    %v321 = vpop.f32.mrb[0].mxu0
    %322 = vdwg.mxu0
    %323 = vst [vmem:[#allocation2] sm:$0xff] %v245
    %324 = vst [vmem:[#allocation2 + $0x8] sm:$0xff] %v250
    %325 = vst [vmem:[#allocation2 + $0x10] sm:$0xff] %v255
    %326 = vst [vmem:[#allocation2 + $0x18] sm:$0xff] %v260
    %327 = vst [vmem:[#allocation2 + $0x20] sm:$0xff] %v265
    %328 = vst [vmem:[#allocation2 + $0x28] sm:$0xff] %v270
    %329 = vst [vmem:[#allocation2 + $0x30] sm:$0xff] %v275
    %330 = vst [vmem:[#allocation2 + $0x38] sm:$0xff] %v280
    %331 = vst [vmem:[#allocation2 + $0x40] sm:$0xff] %v285
    %332 = vst [vmem:[#allocation2 + $0x48] sm:$0xff] %v290
    %333 = vst [vmem:[#allocation2 + $0x50] sm:$0xff] %v295
    %334 = vst [vmem:[#allocation2 + $0x58] sm:$0xff] %v300
    %335 = vst [vmem:[#allocation2 + $0x60] sm:$0xff] %v305
    %336 = vst [vmem:[#allocation2 + $0x68] sm:$0xff] %v310
    %337 = vst [vmem:[#allocation2 + $0x70] sm:$0xff] %v315
    %338 = vst [vmem:[#allocation2 + $0x78] sm:$0xff] %v320
    // Predicated region
    $region14: #{tpu_custom_call.1} parent=1 // pred_check
      _
    $region15: #{tpu_custom_call.1} parent=1 // pred_check_branch
      %340 = sbr.rel (0) target = $region17
    $region16: #{tpu_custom_call.1} parent=1 // pred_region
      %s342 = ssub.s32 2048, 2048
      %343 = vsyncadd [#allocation3], %s342
      %s344 = sshll.u32 [#allocation2], 4
      %s345 = int_to_ptr.vmem [resolvable:$true] %s344
      %350 = dma.vmem_to_hbm [thread:$0]  %s345, 2048, %s3, [#allocation3], 128, 128, 8
    $region17: #{tpu_custom_call.1} parent=1 // pred_fallthru
      _
    // Predicated region
    $region18: #{tpu_custom_call.1} parent=1 // pred_check
      _
    $region19: #{tpu_custom_call.1} parent=1 // pred_check_branch
      %352 = sbr.rel (0) target = $region21
    $region20: #{tpu_custom_call.1} parent=1 // pred_region
      %353 = dma.done [#allocation3], 2048
    $region21: #{tpu_custom_call.1} parent=1 // pred_fallthru
      _
    %354 = vsyncpa [#allocation3], 1

</llo_original>
